<compile_context>
chip_gen: v5e
topology: v5e:2x2
jax: 0.10.0
libtpu: 0.0.40
codegen_flags: <defaults>
</compile_context>

<pallas_src>
import math

import numpy as np
import jax
import jax.numpy as jnp
from jax import lax
from jax.experimental import pallas as pl
from jax.experimental.pallas import tpu as pltpu

# ---- static configuration ---------------------------------------------------
BATCH = 2
FEATURES = 16                      # ctx.model.features
FF_FACTOR = 2.0                    # ctx.model.feed_forward_intermediate_factor
SEQ = 16                           # sequence length
KERNEL_SIZE = 7                    # ctx.model.conv_kernel_size
NORM_POWER = 2                     # ctx.model.norm_power (specialized below)
INIT_SCALE = 1.0                   # LinearAttentionCell(..., init_scale=1)
INTER = int(FEATURES * FF_FACTOR)  # intermediate features = 32
BS = BATCH * SEQ                   # real batch*seq columns = 32
LANES = 128                        # lane-padded column count (full vreg width)


def _triple_norm_p2(scale0, scale1, shift):
    """TripleNorm.forward for norm_power=2, channels on axis 0:
    relu(s0)^3 * s1 + shift, mean-centered over channels, scaled by
    C**(1/2) / ||.||_2 (exactly the reference rstd).  No epsilon -- matches
    the PyTorch code, which would also produce inf/NaN on a zero-variance
    column."""
    s0r = jnp.maximum(scale0, 0.0)
    x = s0r * s0r * s0r * scale1 + shift
    x = x - jnp.mean(x, axis=0, keepdims=True)
    c = x.shape[0]
    rstd = math.sqrt(c) * lax.rsqrt(jnp.sum(x * x, axis=0, keepdims=True))
    return x * rstd


def _cell_kernel(x_ref, csum_ref, w0_ref, w1_ref, w2_ref, o_ref):
    # x_ref   : (F, LANES)      lane-dense input slab; columns >= BS are zeros
    # csum_ref: (LANES, LANES)  causal per-batch cumsum matrix, 1/divisor folded
    # w0_ref  : (3I, F)         1x1 input conv
    # w1_ref  : (3I, K*I)       causal conv, taps stacked along contraction dim
    # w2_ref  : (F, I)          1x1 output conv
    # o_ref   : (F, LANES)      lane-dense output slab
    I = INTER
    K = KERNEL_SIZE
    S = SEQ

    x = x_ref[...]                                                   # (F, LANES)

    # --- 1x1 input conv (moe_check with experts=0) -----------------------------
    y = jnp.dot(w0_ref[...], x, preferred_element_type=jnp.float32)  # (3I, LANES)
    depth = y[:I]
    scale = y[I:2 * I]
    shift = y[2 * I:]

    # --- causal cumsum with the divisor folded in: a single MXU pass -----------
    cum_div = jnp.dot(depth, csum_ref[...],
                      preferred_element_type=jnp.float32)            # (I, LANES)

    h = _triple_norm_p2(cum_div, scale, shift)                       # (I, LANES)

    # Hoisted column indices (one iota).  Zeroing the padded lanes keeps every
    # rolled copy below finite; real columns never read padded ones when their
    # tap mask is true, so valid-lane results are unaffected.
    col = lax.broadcasted_iota(jnp.int32, (I, LANES), 1)
    col_in_seq = col % S
    valid = col < BS
    h = jnp.where(valid, h, 0.0)

    # --- causal conv1d (k=K) fused into ONE matmul (K*I = 224 contraction) -----
    # Tap k multiplies h shifted (K-1-k) steps into the past.  Build the shifted
    # copies entirely in vregs: XLU roll + VPU select, no VMEM scratch round trip.
    taps = []
    for k in range(K):
        sh = K - 1 - k                   # how far tap k looks into the past
        if sh == 0:
            taps.append(h)
        else:
            rolled = pltpu.roll(h, shift=sh, axis=1)
            taps.append(jnp.where(col_in_seq >= sh, rolled, 0.0))
    hstk = jnp.concatenate(taps, axis=0)                             # (K*I, LANES)
    acc = jnp.dot(w1_ref[...], hstk,
                  preferred_element_type=jnp.float32)                # (3I, LANES)

    h2 = _triple_norm_p2(acc[:I], acc[I:2 * I], acc[2 * I:])         # (I, LANES)
    h2 = jnp.where(valid, h2, 0.0)   # defensive: keep padded lanes finite

    # --- 1x1 output conv + init_scale, one lane-dense full-width store ---------
    out = jnp.dot(w2_ref[...], h2, preferred_element_type=jnp.float32)
    o_ref[...] = (out * INIT_SCALE).astype(o_ref.dtype)              # (F, LANES)


def prepare_weights(w0, w1, w2):
    """One-time (init) repack from PyTorch Conv1d layouts to kernel layouts.
    w0: (3I, F, 1), w1: (3I, I, K), w2: (F, I, 1)."""
    w0n = w0[:, :, 0]                                                    # (3I, F)
    # w1s[o, k*I + c] = w1[o, c, k]  (matches the sublane-stacked h copies)
    w1s = jnp.transpose(w1, (0, 2, 1)).reshape(3 * INTER, KERNEL_SIZE * INTER)
    w2n = w2[:, :, 0]                                                    # (F, I)
    return w0n, w1s, w2n


def make_cumsum_matrix():
    """csum[t', t] = 1/((t % S) + 1) when t' and t are in the same batch,
    t' <= t, and both are real (non-padded) columns; else 0.  Pure constant of
    (BATCH, SEQ); built once at init, fed to the kernel as a VMEM input so the
    causal cumsum + divisor is one MXU matmul with no in-kernel mask math."""
    src = np.arange(LANES)[:, None]        # t' (contraction index)
    dst = np.arange(LANES)[None, :]        # t  (output column)
    keep = ((src // SEQ) == (dst // SEQ)) & (src <= dst) & (src < BS) & (dst < BS)
    inv_div = 1.0 / ((dst % SEQ).astype(np.float32) + 1.0)
    return jnp.asarray(np.where(keep, inv_div, 0.0).astype(np.float32))


@jax.jit
def linear_attention_cell(x_ncw, w0n, w1s, w2n, csum):
    """x_ncw: (B, F, S) float32 (PyTorch NCW).  Weights pre-packed by
    prepare_weights; csum from make_cumsum_matrix.  Returns (B, F, S)."""
    # Cheap XLA layout plumbing: fold batch onto lanes and zero-pad 32 -> 128
    # so every in-kernel load/store is a full-lane unmasked op.
    x_flat = jnp.transpose(x_ncw, (1, 0, 2)).reshape(FEATURES, BS)
    x_flat = jnp.pad(x_flat, ((0, 0), (0, LANES - BS)))

    out_flat = pl.pallas_call(
        _cell_kernel,
        out_shape=jax.ShapeDtypeStruct((FEATURES, LANES), jnp.float32),
        grid_spec=pltpu.PrefetchScalarGridSpec(
            num_scalar_prefetch=0,
            grid=(1,),
            in_specs=[
                pl.BlockSpec((FEATURES, LANES), lambda i: (0, 0)),
                pl.BlockSpec((LANES, LANES), lambda i: (0, 0)),
                pl.BlockSpec((3 * INTER, FEATURES), lambda i: (0, 0)),
                pl.BlockSpec((3 * INTER, KERNEL_SIZE * INTER), lambda i: (0, 0)),
                pl.BlockSpec((FEATURES, INTER), lambda i: (0, 0)),
            ],
            out_specs=pl.BlockSpec((FEATURES, LANES), lambda i: (0, 0)),
        ),
        # Single instance here.  When many (layer, batch) instances are batched
        # into this call, this axis becomes the instance grid and should be
        # marked "parallel" so it shards across v7x's 2 TensorCores.
        compiler_params=pltpu.CompilerParams(
            dimension_semantics=("arbitrary",)),
    )(x_flat, csum, w0n, w1s, w2n)

    # Un-pad and unfold back to NCW outside the kernel.
    out = out_flat[:, :BS].reshape(FEATURES, BATCH, SEQ)
    return jnp.transpose(out, (1, 0, 2))


def _init_weight(key, shape):
    """Deterministic synthetic init (stands in for the orthonormal init)."""
    fan_in = math.prod(shape[1:])
    return jax.random.normal(key, shape, dtype=jnp.float32) / math.sqrt(fan_in)


if __name__ == "__main__":
    key = jax.random.PRNGKey(0)
    kx, k0, k1, k2 = jax.random.split(key, 4)

    x = jax.random.normal(kx, (BATCH, FEATURES, SEQ), dtype=jnp.float32)
    w0 = _init_weight(k0, (3 * INTER, FEATURES, 1))            # 1x1 input conv
    w1 = _init_weight(k1, (3 * INTER, INTER, KERNEL_SIZE))     # causal conv k=7
    w2 = _init_weight(k2, (FEATURES, INTER, 1))                # 1x1 output conv

    # One-time init work, outside the jitted hot path.
    w0n, w1s, w2n = prepare_weights(w0, w1, w2)
    csum = make_cumsum_matrix()

    out = linear_attention_cell(x, w0n, w1s, w2n, csum)
    out = jax.block_until_ready(out)
    assert out.shape == (BATCH, FEATURES, SEQ)
    assert bool(jnp.all(jnp.isfinite(out)))
    # TODO(synk): MoE top-k routing, PKM, Riemann noise and eval-time caching
    # paths are config-disabled here (experts=0, pkm off, no caching) and not
    # implemented.
    print("KERNEL_OK")
</pallas_src>

<mosaic_0001>
module attributes {stable_mosaic.version = 11 : i64} {
  func.func @_cell_kernel(%arg0: i32, %arg1: memref<16x128xf32, #tpu.memory_space<vmem>>, %arg2: memref<128x128xf32, #tpu.memory_space<vmem>>, %arg3: memref<96x16xf32, #tpu.memory_space<vmem>>, %arg4: memref<96x224xf32, #tpu.memory_space<vmem>>, %arg5: memref<16x32xf32, #tpu.memory_space<vmem>>, %arg6: memref<16x128xf32, #tpu.memory_space<vmem>>) attributes {dimension_semantics = [#tpu.dimension_semantics<arbitrary>], iteration_bounds = array<i64: 1>, scalar_prefetch = 0 : i64, scratch_operands = 0 : i64, tpu.core_type = #tpu.core_type<tc>, window_params = [{pipeline_mode = #tpu.pipeline_mode<synchronous>, transform_indices = @transform_0, window_bounds = array<i64: 16, 128>}, {pipeline_mode = #tpu.pipeline_mode<synchronous>, transform_indices = @transform_1, window_bounds = array<i64: 128, 128>}, {pipeline_mode = #tpu.pipeline_mode<synchronous>, transform_indices = @transform_2, window_bounds = array<i64: 96, 16>}, {pipeline_mode = #tpu.pipeline_mode<synchronous>, transform_indices = @transform_3, window_bounds = array<i64: 96, 224>}, {pipeline_mode = #tpu.pipeline_mode<synchronous>, transform_indices = @transform_4, window_bounds = array<i64: 16, 32>}, {pipeline_mode = #tpu.pipeline_mode<synchronous>, transform_indices = @transform_5, window_bounds = array<i64: 16, 128>}]} {
    %c0 = arith.constant 0 : index
    %c0_0 = arith.constant 0 : index
    %0 = vector.load %arg1[%c0, %c0_0] : memref<16x128xf32, #tpu.memory_space<vmem>>, vector<16x128xf32>
    %c0_1 = arith.constant 0 : index
    %c0_2 = arith.constant 0 : index
    %1 = vector.load %arg3[%c0_1, %c0_2] : memref<96x16xf32, #tpu.memory_space<vmem>>, vector<96x16xf32>
    %cst = arith.constant dense<0.000000e+00> : vector<96x128xf32>
    %2 = tpu.matmul %1, %0, %cst {dimension_numbers = #tpu.dot_dimension_numbers<[1], [0], [0], [1], [0, 0, 1, 1], [], []>} : vector<96x16xf32>, vector<16x128xf32>, vector<96x128xf32> -> vector<96x128xf32>
    %3 = vector.extract_strided_slice %2 {offsets = [0, 0], sizes = [32, 128], strides = [1, 1]} : vector<96x128xf32> to vector<32x128xf32>
    %4 = vector.extract_strided_slice %2 {offsets = [32, 0], sizes = [32, 128], strides = [1, 1]} : vector<96x128xf32> to vector<32x128xf32>
    %5 = vector.extract_strided_slice %2 {offsets = [64, 0], sizes = [32, 128], strides = [1, 1]} : vector<96x128xf32> to vector<32x128xf32>
    %c0_3 = arith.constant 0 : index
    %c0_4 = arith.constant 0 : index
    %6 = vector.load %arg2[%c0_3, %c0_4] : memref<128x128xf32, #tpu.memory_space<vmem>>, vector<128x128xf32>
    %cst_5 = arith.constant dense<0.000000e+00> : vector<32x128xf32>
    %7 = tpu.matmul %3, %6, %cst_5 {dimension_numbers = #tpu.dot_dimension_numbers<[1], [0], [0], [1], [0, 0, 1, 1], [], []>} : vector<32x128xf32>, vector<128x128xf32>, vector<32x128xf32> -> vector<32x128xf32>
    %cst_6 = arith.constant 0.000000e+00 : f32
    %8 = vector.broadcast %cst_6 : f32 to vector<32x128xf32>
    %9 = arith.maximumf %7, %8 : vector<32x128xf32>
    %10 = arith.mulf %9, %9 : vector<32x128xf32>
    %11 = arith.mulf %10, %9 : vector<32x128xf32>
    %12 = arith.mulf %11, %4 : vector<32x128xf32>
    %13 = arith.addf %12, %5 : vector<32x128xf32>
    %cst_7 = arith.constant dense<0.000000e+00> : vector<128xf32>
    %14 = vector.multi_reduction <add>, %13, %cst_7 [0] : vector<32x128xf32> to vector<128xf32>
    %15 = vector.shape_cast %14 : vector<128xf32> to vector<1x128xf32>
    %cst_8 = arith.constant 3.200000e+01 : f32
    %16 = vector.broadcast %cst_8 : f32 to vector<1x128xf32>
    %17 = arith.divf %15, %16 : vector<1x128xf32>
    %18 = vector.broadcast %17 : vector<1x128xf32> to vector<32x128xf32>
    %19 = arith.subf %13, %18 : vector<32x128xf32>
    %20 = arith.mulf %19, %19 : vector<32x128xf32>
    %cst_9 = arith.constant dense<0.000000e+00> : vector<128xf32>
    %21 = vector.multi_reduction <add>, %20, %cst_9 [0] : vector<32x128xf32> to vector<128xf32>
    %22 = vector.shape_cast %21 : vector<128xf32> to vector<1x128xf32>
    %23 = math.rsqrt %22 : vector<1x128xf32>
    %cst_10 = arith.constant 5.65685415 : f32
    %24 = vector.broadcast %cst_10 : f32 to vector<1x128xf32>
    %25 = arith.mulf %24, %23 : vector<1x128xf32>
    %26 = vector.broadcast %25 : vector<1x128xf32> to vector<32x128xf32>
    %27 = arith.mulf %19, %26 : vector<32x128xf32>
    %28 = tpu.iota {dimensions = array<i32: 1>} : vector<32x128xi32>
    %c16_i32 = arith.constant 16 : i32
    %c0_i32 = arith.constant 0 : i32
    %29 = arith.cmpi eq, %c16_i32, %c0_i32 : i32
    %c1_i32 = arith.constant 1 : i32
    %30 = arith.select %29, %c1_i32, %c16_i32 : i32
    %31 = vector.broadcast %30 : i32 to vector<32x128xi32>
    %32 = arith.remsi %28, %31 : vector<32x128xi32>
    %c0_i32_11 = arith.constant 0 : i32
    %33 = vector.broadcast %c0_i32_11 : i32 to vector<32x128xi32>
    %34 = arith.cmpi ne, %32, %33 : vector<32x128xi32>
    %c0_i32_12 = arith.constant 0 : i32
    %35 = vector.broadcast %c0_i32_12 : i32 to vector<32x128xi32>
    %36 = arith.cmpi slt, %32, %35 : vector<32x128xi32>
    %c0_i32_13 = arith.constant 0 : i32
    %37 = arith.cmpi slt, %30, %c0_i32_13 : i32
    %38 = vector.broadcast %37 : i1 to vector<32x128xi1>
    %39 = vector.broadcast %38 : vector<32x128xi1> to vector<32x128xi1>
    %40 = arith.xori %36, %39 : vector<32x128xi1>
    %41 = arith.andi %40, %34 : vector<32x128xi1>
    %42 = vector.broadcast %30 : i32 to vector<32x128xi32>
    %43 = arith.addi %32, %42 : vector<32x128xi32>
    %44 = arith.select %41, %43, %32 : vector<32x128xi1>, vector<32x128xi32>
    %c32_i32 = arith.constant 32 : i32
    %45 = vector.broadcast %c32_i32 : i32 to vector<32x128xi32>
    %46 = arith.cmpi slt, %28, %45 : vector<32x128xi32>
    %cst_14 = arith.constant 0.000000e+00 : f32
    %47 = vector.broadcast %cst_14 : f32 to vector<32x128xf32>
    %48 = arith.select %46, %27, %47 : vector<32x128xi1>, vector<32x128xf32>
    %c6_i32 = arith.constant 6 : i32
    %49 = tpu.dynamic_rotate %48 by %c6_i32 dim 1 : vector<32x128xf32>, i32 -> vector<32x128xf32>
    %c6_i32_15 = arith.constant 6 : i32
    %50 = vector.broadcast %c6_i32_15 : i32 to vector<32x128xi32>
    %51 = arith.cmpi sge, %44, %50 : vector<32x128xi32>
    %cst_16 = arith.constant 0.000000e+00 : f32
    %52 = vector.broadcast %cst_16 : f32 to vector<32x128xf32>
    %53 = arith.select %51, %49, %52 : vector<32x128xi1>, vector<32x128xf32>
    %c5_i32 = arith.constant 5 : i32
    %54 = tpu.dynamic_rotate %48 by %c5_i32 dim 1 : vector<32x128xf32>, i32 -> vector<32x128xf32>
    %c5_i32_17 = arith.constant 5 : i32
    %55 = vector.broadcast %c5_i32_17 : i32 to vector<32x128xi32>
    %56 = arith.cmpi sge, %44, %55 : vector<32x128xi32>
    %cst_18 = arith.constant 0.000000e+00 : f32
    %57 = vector.broadcast %cst_18 : f32 to vector<32x128xf32>
    %58 = arith.select %56, %54, %57 : vector<32x128xi1>, vector<32x128xf32>
    %c4_i32 = arith.constant 4 : i32
    %59 = tpu.dynamic_rotate %48 by %c4_i32 dim 1 : vector<32x128xf32>, i32 -> vector<32x128xf32>
    %c4_i32_19 = arith.constant 4 : i32
    %60 = vector.broadcast %c4_i32_19 : i32 to vector<32x128xi32>
    %61 = arith.cmpi sge, %44, %60 : vector<32x128xi32>
    %cst_20 = arith.constant 0.000000e+00 : f32
    %62 = vector.broadcast %cst_20 : f32 to vector<32x128xf32>
    %63 = arith.select %61, %59, %62 : vector<32x128xi1>, vector<32x128xf32>
    %c3_i32 = arith.constant 3 : i32
    %64 = tpu.dynamic_rotate %48 by %c3_i32 dim 1 : vector<32x128xf32>, i32 -> vector<32x128xf32>
    %c3_i32_21 = arith.constant 3 : i32
    %65 = vector.broadcast %c3_i32_21 : i32 to vector<32x128xi32>
    %66 = arith.cmpi sge, %44, %65 : vector<32x128xi32>
    %cst_22 = arith.constant 0.000000e+00 : f32
    %67 = vector.broadcast %cst_22 : f32 to vector<32x128xf32>
    %68 = arith.select %66, %64, %67 : vector<32x128xi1>, vector<32x128xf32>
    %c2_i32 = arith.constant 2 : i32
    %69 = tpu.dynamic_rotate %48 by %c2_i32 dim 1 : vector<32x128xf32>, i32 -> vector<32x128xf32>
    %c2_i32_23 = arith.constant 2 : i32
    %70 = vector.broadcast %c2_i32_23 : i32 to vector<32x128xi32>
    %71 = arith.cmpi sge, %44, %70 : vector<32x128xi32>
    %cst_24 = arith.constant 0.000000e+00 : f32
    %72 = vector.broadcast %cst_24 : f32 to vector<32x128xf32>
    %73 = arith.select %71, %69, %72 : vector<32x128xi1>, vector<32x128xf32>
    %c1_i32_25 = arith.constant 1 : i32
    %74 = tpu.dynamic_rotate %48 by %c1_i32_25 dim 1 : vector<32x128xf32>, i32 -> vector<32x128xf32>
    %c1_i32_26 = arith.constant 1 : i32
    %75 = vector.broadcast %c1_i32_26 : i32 to vector<32x128xi32>
    %76 = arith.cmpi sge, %44, %75 : vector<32x128xi32>
    %cst_27 = arith.constant 0.000000e+00 : f32
    %77 = vector.broadcast %cst_27 : f32 to vector<32x128xf32>
    %78 = arith.select %76, %74, %77 : vector<32x128xi1>, vector<32x128xf32>
    %79 = tpu.concatenate %53, %58, %63, %68, %73, %78, %48 in 0 : vector<32x128xf32>, vector<32x128xf32>, vector<32x128xf32>, vector<32x128xf32>, vector<32x128xf32>, vector<32x128xf32>, vector<32x128xf32> -> vector<224x128xf32>
    %c0_28 = arith.constant 0 : index
    %c0_29 = arith.constant 0 : index
    %80 = vector.load %arg4[%c0_28, %c0_29] : memref<96x224xf32, #tpu.memory_space<vmem>>, vector<96x224xf32>
    %cst_30 = arith.constant dense<0.000000e+00> : vector<96x128xf32>
    %81 = tpu.matmul %80, %79, %cst_30 {dimension_numbers = #tpu.dot_dimension_numbers<[1], [0], [0], [1], [0, 0, 1, 1], [], []>} : vector<96x224xf32>, vector<224x128xf32>, vector<96x128xf32> -> vector<96x128xf32>
    %82 = vector.extract_strided_slice %81 {offsets = [0, 0], sizes = [32, 128], strides = [1, 1]} : vector<96x128xf32> to vector<32x128xf32>
    %83 = vector.extract_strided_slice %81 {offsets = [32, 0], sizes = [32, 128], strides = [1, 1]} : vector<96x128xf32> to vector<32x128xf32>
    %84 = vector.extract_strided_slice %81 {offsets = [64, 0], sizes = [32, 128], strides = [1, 1]} : vector<96x128xf32> to vector<32x128xf32>
    %cst_31 = arith.constant 0.000000e+00 : f32
    %85 = vector.broadcast %cst_31 : f32 to vector<32x128xf32>
    %86 = arith.maximumf %82, %85 : vector<32x128xf32>
    %87 = arith.mulf %86, %86 : vector<32x128xf32>
    %88 = arith.mulf %87, %86 : vector<32x128xf32>
    %89 = arith.mulf %88, %83 : vector<32x128xf32>
    %90 = arith.addf %89, %84 : vector<32x128xf32>
    %cst_32 = arith.constant dense<0.000000e+00> : vector<128xf32>
    %91 = vector.multi_reduction <add>, %90, %cst_32 [0] : vector<32x128xf32> to vector<128xf32>
    %92 = vector.shape_cast %91 : vector<128xf32> to vector<1x128xf32>
    %cst_33 = arith.constant 3.200000e+01 : f32
    %93 = vector.broadcast %cst_33 : f32 to vector<1x128xf32>
    %94 = arith.divf %92, %93 : vector<1x128xf32>
    %95 = vector.broadcast %94 : vector<1x128xf32> to vector<32x128xf32>
    %96 = arith.subf %90, %95 : vector<32x128xf32>
    %97 = arith.mulf %96, %96 : vector<32x128xf32>
    %cst_34 = arith.constant dense<0.000000e+00> : vector<128xf32>
    %98 = vector.multi_reduction <add>, %97, %cst_34 [0] : vector<32x128xf32> to vector<128xf32>
    %99 = vector.shape_cast %98 : vector<128xf32> to vector<1x128xf32>
    %100 = math.rsqrt %99 : vector<1x128xf32>
    %cst_35 = arith.constant 5.65685415 : f32
    %101 = vector.broadcast %cst_35 : f32 to vector<1x128xf32>
    %102 = arith.mulf %101, %100 : vector<1x128xf32>
    %103 = vector.broadcast %102 : vector<1x128xf32> to vector<32x128xf32>
    %104 = arith.mulf %96, %103 : vector<32x128xf32>
    %cst_36 = arith.constant 0.000000e+00 : f32
    %105 = vector.broadcast %cst_36 : f32 to vector<32x128xf32>
    %106 = arith.select %46, %104, %105 : vector<32x128xi1>, vector<32x128xf32>
    %c0_37 = arith.constant 0 : index
    %c0_38 = arith.constant 0 : index
    %107 = vector.load %arg5[%c0_37, %c0_38] : memref<16x32xf32, #tpu.memory_space<vmem>>, vector<16x32xf32>
    %cst_39 = arith.constant dense<0.000000e+00> : vector<16x128xf32>
    %108 = tpu.matmul %107, %106, %cst_39 {dimension_numbers = #tpu.dot_dimension_numbers<[1], [0], [0], [1], [0, 0, 1, 1], [], []>} : vector<16x32xf32>, vector<32x128xf32>, vector<16x128xf32> -> vector<16x128xf32>
    %cst_40 = arith.constant 1.000000e+00 : f32
    %109 = vector.broadcast %cst_40 : f32 to vector<16x128xf32>
    %110 = arith.mulf %108, %109 : vector<16x128xf32>
    %c0_41 = arith.constant 0 : index
    %c0_42 = arith.constant 0 : index
    %111 = vector.load %arg6[%c0_41, %c0_42] : memref<16x128xf32, #tpu.memory_space<vmem>>, vector<16x128xf32>
    tpu.vector_store %arg6[%c0_41, %c0_42], %110 {strides = array<i32>} : memref<16x128xf32, #tpu.memory_space<vmem>>, vector<16x128xf32>,
    return
  }
  func.func @transform_0(%arg0: i32) -> (i32, i32) {
    %c0_i32 = arith.constant 0 : i32
    %c0_i32_0 = arith.constant 0 : i32
    %c0_i32_1 = arith.constant 0 : i32
    return %c0_i32, %c0_i32_0 : i32, i32
  }
  func.func @transform_1(%arg0: i32) -> (i32, i32) {
    %c0_i32 = arith.constant 0 : i32
    %c0_i32_0 = arith.constant 0 : i32
    %c0_i32_1 = arith.constant 0 : i32
    return %c0_i32, %c0_i32_0 : i32, i32
  }
  func.func @transform_2(%arg0: i32) -> (i32, i32) {
    %c0_i32 = arith.constant 0 : i32
    %c0_i32_0 = arith.constant 0 : i32
    %c0_i32_1 = arith.constant 0 : i32
    return %c0_i32, %c0_i32_0 : i32, i32
  }
  func.func @transform_3(%arg0: i32) -> (i32, i32) {
    %c0_i32 = arith.constant 0 : i32
    %c0_i32_0 = arith.constant 0 : i32
    %c0_i32_1 = arith.constant 0 : i32
    return %c0_i32, %c0_i32_0 : i32, i32
  }
  func.func @transform_4(%arg0: i32) -> (i32, i32) {
    %c0_i32 = arith.constant 0 : i32
    %c0_i32_0 = arith.constant 0 : i32
    %c0_i32_1 = arith.constant 0 : i32
    return %c0_i32, %c0_i32_0 : i32, i32
  }
  func.func @transform_5(%arg0: i32) -> (i32, i32) {
    %c0_i32 = arith.constant 0 : i32
    %c0_i32_0 = arith.constant 0 : i32
    %c0_i32_1 = arith.constant 0 : i32
    return %c0_i32, %c0_i32_0 : i32, i32
  }
}

</mosaic_0001>

<llo_original>
// kernel: linear_attention_cell.1
$region0: #{linear_attention_cell.1}
  #allocation0 [shape = 'u32[]', space=smem, size = 0x4, offset = 0x4, fixed_abs, tag = 'smem constant byte address 0x4 - core index']
  #allocation1 [shape = 'u32[72,128]{1,0:T(1,128)}', space=vmem, size = 0x9000, scoped, tag = 'internal scratch']
  %s0 = inlined_call_operand.vmem [shape: f32[16,128], index: 0, kind: input, shape index: {}]
  %s1 = inlined_call_operand.vmem [shape: f32[128,128], index: 1, kind: input, shape index: {}]
  %s2 = inlined_call_operand.vmem [shape: f32[96,16], index: 2, kind: input, shape index: {}]
  %s3 = inlined_call_operand.hbm [shape: f32[96,224], index: 3, kind: input, shape index: {}]
  %s4 = inlined_call_operand.vmem [shape: f32[16,32], index: 4, kind: input, shape index: {}]
  %s5 = inlined_call_operand.vmem [shape: f32[16,128], index: 5, kind: output, shape index: {}]
  %s6 = sld [smem:[#allocation0]]
  $region34: #{linear_attention_cell.1} parent=0
    _
  %s8 = ssub.s32 1, %s6
  %s9 = scalar_select 0, %s8, %s6
  $region1: #{linear_attention_cell.1} parent=0
    #allocation2 [shape = 'u8[98304]{0}', space=vmem, size = 0x18000, scoped, tag = 'input window, operand 3, single buffered']
    #allocation3 [shape = 's32[1]{0}', space=sflag, size = 0x4, scoped, tag = 'scoped memory for linear_attention_cell.1']
    %10 = vsyncpa [#allocation3], 0
    // Predicated region
    $region2: #{linear_attention_cell.1} parent=1 // pred_check
      _
    $region3: #{linear_attention_cell.1} parent=1 // pred_check_branch
      %12 = sbr.rel (0) target = $region5
    $region4: #{linear_attention_cell.1} parent=1 // pred_region
      _
    $region5: #{linear_attention_cell.1} parent=1 // pred_fallthru
      _
    // Predicated region
    $region6: #{linear_attention_cell.1} parent=1 // pred_check
      _
    $region7: #{linear_attention_cell.1} parent=1 // pred_check_branch
      %14 = sbr.rel (0) target = $region9
    $region8: #{linear_attention_cell.1} parent=1 // pred_region
      _
    $region9: #{linear_attention_cell.1} parent=1 // pred_fallthru
      _
    // Predicated region
    $region10: #{linear_attention_cell.1} parent=1 // pred_check
      _
    $region11: #{linear_attention_cell.1} parent=1 // pred_check_branch
      %16 = sbr.rel (0) target = $region13
    $region12: #{linear_attention_cell.1} parent=1 // pred_region
      _
    $region13: #{linear_attention_cell.1} parent=1 // pred_fallthru
      _
    // Predicated region
    $region14: #{linear_attention_cell.1} parent=1 // pred_check
      _
    $region15: #{linear_attention_cell.1} parent=1 // pred_check_branch
      %18 = sbr.rel (0) target = $region17
    $region16: #{linear_attention_cell.1} parent=1 // pred_region
      %20 = vsyncadd [#allocation3], 0
      %s21 = sshll.u32 %s3, 4
      %s22 = int_to_ptr.hbm [resolvable:$true] %s21
      %s23 = sshll.u32 [#allocation2], 4
      %s24 = int_to_ptr.vmem [resolvable:$true] %s23
      %29 = dma.hbm_to_vmem [thread:$0]  %s22, 3072, %s24, [#allocation3], 256, 256, 16
    $region17: #{linear_attention_cell.1} parent=1 // pred_fallthru
      _
    // Predicated region
    $region18: #{linear_attention_cell.1} parent=1 // pred_check
      _
    $region19: #{linear_attention_cell.1} parent=1 // pred_check_branch
      %31 = sbr.rel (0) target = $region21
    $region20: #{linear_attention_cell.1} parent=1 // pred_region
      _
    $region21: #{linear_attention_cell.1} parent=1 // pred_fallthru
      _
    // Predicated region
    $region22: #{linear_attention_cell.1} parent=1 // pred_check
      _
    $region23: #{linear_attention_cell.1} parent=1 // pred_check_branch
      %33 = sbr.rel (0) target = $region25
    $region24: #{linear_attention_cell.1} parent=1 // pred_region
      %35 = dma.done [#allocation3], 3072
    $region25: #{linear_attention_cell.1} parent=1 // pred_fallthru
      _
    %v36 = vld [vmem:[%s0] sm:$0xff]
    %v37 = vld [vmem:[%s0 + $0x8] sm:$0xff]
    %v38 = vld [vmem:[%s2] sm:$0xff]
    %v39 = vld [vmem:[%s2 + $0x8] sm:$0xff]
    %v40 = vld [vmem:[%s2 + $0x10] sm:$0xff]
    %v41 = vld [vmem:[%s2 + $0x18] sm:$0xff]
    %v42 = vld [vmem:[%s2 + $0x20] sm:$0xff]
    %v43 = vld [vmem:[%s2 + $0x28] sm:$0xff]
    %v44 = vld [vmem:[%s2 + $0x30] sm:$0xff]
    %v45 = vld [vmem:[%s2 + $0x38] sm:$0xff]
    %v46 = vld [vmem:[%s2 + $0x40] sm:$0xff]
    %v47 = vld [vmem:[%s2 + $0x48] sm:$0xff]
    %v48 = vld [vmem:[%s2 + $0x50] sm:$0xff]
    %v49 = vld [vmem:[%s2 + $0x58] sm:$0xff]
    %vm50 = vcmask 130048
    %v52 = vsel %vm50, %v38, 0
    %v55 = vsel %vm50, %v39, 0
    %v58 = vsel %vm50, %v40, 0
    %v61 = vsel %vm50, %v41, 0
    %v64 = vsel %vm50, %v42, 0
    %v67 = vsel %vm50, %v43, 0
    %v70 = vsel %vm50, %v44, 0
    %v73 = vsel %vm50, %v45, 0
    %v76 = vsel %vm50, %v46, 0
    %v79 = vsel %vm50, %v47, 0
    %v82 = vsel %vm50, %v48, 0
    %v85 = vsel %vm50, %v49, 0
    %87 = vmatpush.msra.mxu0 0.0
    %88 = vmatpush.msra.mxu0 0.0
    %89 = vmatpush.msra.mxu0 0.0
    %90 = vmatpush.msra.mxu0 0.0
    %91 = vmatpush.msra.mxu0 0.0
    %92 = vmatpush.msra.mxu0 0.0
    %93 = vmatpush.msra.mxu0 0.0
    %94 = vmatpush.msra.mxu0 0.0
    %95 = vmatpush.msra.mxu0 0.0
    %96 = vmatpush.msra.mxu0 0.0
    %97 = vmatpush.msra.mxu0 0.0
    %98 = vmatpush.msra.mxu0 0.0
    %99 = vmatpush.msra.mxu0 0.0
    %100 = vmatpush.msra.mxu0 0.0
    %101 = vmatpush.msra.mxu0 %v37
    %102 = vmatpush.msra.mxu0 %v36
    %103 = vmatmul.f32.gmra.mxu0 %v52
    %v104 = vpop.f32.mrf.mxu0
    %v105 = vadd.f32 0.0, %v104
    %106 = vmatmul.f32.gmra.mxu0 %v55
    %v107 = vpop.f32.mrf.mxu0
    %v108 = vadd.f32 0.0, %v107
    %109 = vmatmul.f32.gmra.mxu0 %v58
    %v110 = vpop.f32.mrf.mxu0
    %v111 = vadd.f32 0.0, %v110
    %112 = vmatmul.f32.gmra.mxu0 %v61
    %v113 = vpop.f32.mrf.mxu0
    %v114 = vadd.f32 0.0, %v113
    %115 = vmatmul.f32.gmra.mxu0 %v64
    %v116 = vpop.f32.mrf.mxu0
    %v117 = vadd.f32 0.0, %v116
    %118 = vmatmul.f32.gmra.mxu0 %v67
    %v119 = vpop.f32.mrf.mxu0
    %v120 = vadd.f32 0.0, %v119
    %121 = vmatmul.f32.gmra.mxu0 %v70
    %v122 = vpop.f32.mrf.mxu0
    %v123 = vadd.f32 0.0, %v122
    %124 = vmatmul.f32.gmra.mxu0 %v73
    %v125 = vpop.f32.mrf.mxu0
    %v126 = vadd.f32 0.0, %v125
    %127 = vmatmul.f32.gmra.mxu0 %v76
    %v128 = vpop.f32.mrf.mxu0
    %v129 = vadd.f32 0.0, %v128
    %130 = vmatmul.f32.gmra.mxu0 %v79
    %v131 = vpop.f32.mrf.mxu0
    %v132 = vadd.f32 0.0, %v131
    %133 = vmatmul.f32.gmra.mxu0 %v82
    %v134 = vpop.f32.mrf.mxu0
    %v135 = vadd.f32 0.0, %v134
    %136 = vmatmul.f32.gmra.mxu0 %v85
    %v137 = vpop.f32.mrf.mxu0
    %v138 = vadd.f32 0.0, %v137
    %139 = vdwg.mxu0
    %v140 = vld [vmem:[%s1] sm:$0xff]
    %v141 = vld [vmem:[%s1 + $0x8] sm:$0xff]
    %v142 = vld [vmem:[%s1 + $0x10] sm:$0xff]
    %v143 = vld [vmem:[%s1 + $0x18] sm:$0xff]
    %v144 = vld [vmem:[%s1 + $0x20] sm:$0xff]
    %v145 = vld [vmem:[%s1 + $0x28] sm:$0xff]
    %v146 = vld [vmem:[%s1 + $0x30] sm:$0xff]
    %v147 = vld [vmem:[%s1 + $0x38] sm:$0xff]
    %v148 = vld [vmem:[%s1 + $0x40] sm:$0xff]
    %v149 = vld [vmem:[%s1 + $0x48] sm:$0xff]
    %v150 = vld [vmem:[%s1 + $0x50] sm:$0xff]
    %v151 = vld [vmem:[%s1 + $0x58] sm:$0xff]
    %v152 = vld [vmem:[%s1 + $0x60] sm:$0xff]
    %v153 = vld [vmem:[%s1 + $0x68] sm:$0xff]
    %v154 = vld [vmem:[%s1 + $0x70] sm:$0xff]
    %v155 = vld [vmem:[%s1 + $0x78] sm:$0xff]
    %156 = vmatpush.msra.mxu0 %v155
    %157 = vmatpush.msra.mxu0 %v154
    %158 = vmatpush.msra.mxu0 %v153
    %159 = vmatpush.msra.mxu0 %v152
    %160 = vmatpush.msra.mxu0 %v151
    %161 = vmatpush.msra.mxu0 %v150
    %162 = vmatpush.msra.mxu0 %v149
    %163 = vmatpush.msra.mxu0 %v148
    %164 = vmatpush.msra.mxu0 %v147
    %165 = vmatpush.msra.mxu0 %v146
    %166 = vmatpush.msra.mxu0 %v145
    %167 = vmatpush.msra.mxu0 %v144
    %168 = vmatpush.msra.mxu0 %v143
    %169 = vmatpush.msra.mxu0 %v142
    %170 = vmatpush.msra.mxu0 %v141
    %171 = vmatpush.msra.mxu0 %v140
    %172 = vmatmul.f32.gmra.mxu0 %v105
    %v173 = vpop.f32.mrf.mxu0
    %v174 = vadd.f32 0.0, %v173
    %175 = vmatmul.f32.gmra.mxu0 %v108
    %v176 = vpop.f32.mrf.mxu0
    %v177 = vadd.f32 0.0, %v176
    %178 = vmatmul.f32.gmra.mxu0 %v111
    %v179 = vpop.f32.mrf.mxu0
    %v180 = vadd.f32 0.0, %v179
    %181 = vmatmul.f32.gmra.mxu0 %v114
    %v182 = vpop.f32.mrf.mxu0
    %v183 = vadd.f32 0.0, %v182
    %184 = vdwg.mxu0
    %v185 = vmax.f32 %v174, 0.0
    %v186 = vmax.f32 %v177, 0.0
    %v187 = vmax.f32 %v180, 0.0
    %v188 = vmax.f32 %v183, 0.0
    %v189 = vmul.f32 %v185, %v185
    %v190 = vmul.f32 %v186, %v186
    %v191 = vmul.f32 %v187, %v187
    %v192 = vmul.f32 %v188, %v188
    %v193 = vmul.f32 %v189, %v185
    %v194 = vmul.f32 %v190, %v186
    %v195 = vmul.f32 %v191, %v187
    %v196 = vmul.f32 %v192, %v188
    %v197 = vmul.f32 %v193, %v117
    %v198 = vmul.f32 %v194, %v120
    %v199 = vmul.f32 %v195, %v123
    %v200 = vmul.f32 %v196, %v126
    %v201 = vadd.f32 %v197, %v129
    %v202 = vadd.f32 %v198, %v132
    %v203 = vadd.f32 %v199, %v135
    %v204 = vadd.f32 %v200, %v138
    %v205 = vadd.f32 %v201, %v202
    %v206 = vadd.f32 %v205, %v203
    %v207 = vadd.f32 %v206, %v204
    %v208 = vrot.slane %v207, 4
    %v209 = vadd.f32 %v207, %v208
    %v210 = vrot.slane %v209, 2
    %v211 = vadd.f32 %v209, %v210
    %v212 = vrot.slane %v211, 1
    %v213 = vadd.f32 %v211, %v212
    %v214 = vrcp.pop 32.0
    %v215 = vmul.f32 32.0, %v214
    %v216 = vsub.f32 1.0, %v215
    %v217 = vmul.f32 %v214, %v216
    %v218 = vadd.f32 %v214, %v217
    %vm219 = vweird.f32 %v214
    %v220 = vsel %vm219, %v214, %v218
    %v221 = vmul.f32 %v213, %v220
    %v222 = vsub.f32 %v201, %v221
    %v223 = vsub.f32 %v202, %v221
    %v224 = vsub.f32 %v203, %v221
    %v225 = vsub.f32 %v204, %v221
    %v226 = vmul.f32 %v222, %v222
    %v227 = vmul.f32 %v223, %v223
    %v228 = vmul.f32 %v224, %v224
    %v229 = vmul.f32 %v225, %v225
    %v230 = vadd.f32 %v226, %v227
    %v231 = vadd.f32 %v230, %v228
    %v232 = vadd.f32 %v231, %v229
    %v233 = vrot.slane %v232, 4
    %v234 = vadd.f32 %v232, %v233
    %v235 = vrot.slane %v234, 2
    %v236 = vadd.f32 %v234, %v235
    %v237 = vrot.slane %v236, 1
    %v238 = vadd.f32 %v236, %v237
    %v239 = vrsqrt.pop %v238
    %v240 = vmul.f32 %v239, %v238
    %v241 = vmul.f32 %v240, %v239
    %v242 = vmul.f32 0.5, %v241
    %v243 = vsub.f32 1.5, %v242
    %v244 = vmul.f32 %v239, %v243
    %vm245 = vweird.f32 %v238
    %vm246 = vweird.f32 %v239
    %vm247 = vmor %vm245, %vm246
    %v248 = vsel %vm247, %v239, %v244
    %v249 = vmul.f32 %v248, 5.656854
    %v250 = vmul.f32 %v222, %v249
    %v251 = vmul.f32 %v223, %v249
    %v252 = vmul.f32 %v224, %v249
    %v253 = vmul.f32 %v225, %v249
    %v254 = vlaneseq
    %v255 = vand.u32 %v254, 127
    %vm256 = vcmp.lt.s32.totalorder %v255, 0
    %v257 = vsub.s32 0, %v255
    %v258 = vsel %vm256, %v257, %v255
    %v259 = vshrl.u32 %v258, 4
    %v260 = vand.u32 %v258, 15
    %v261 = vsub.s32 0, %v260
    %v262 = vsel %vm256, %v261, %v260
    %vm263 = vcmp.ne.s32.totalorder %v262, 0
    %vm264 = vcmp.lt.s32.totalorder %v262, 0
    %vm265 = vmand %vm264, %vm263
    %v266 = vadd.s32 %v262, 16
    %v267 = vsel %vm265, %v266, %v262
    %vm268 = vcmp.lt.s32.totalorder %v255, 32
    %v269 = vsel %vm268, %v250, 0.0
    %v270 = vsel %vm268, %v251, 0.0
    %v271 = vsel %vm268, %v252, 0.0
    %v272 = vsel %vm268, %v253, 0.0
    %273 = vrot.lane.b32.xlu0 %v269, 6
    %v274 = vpop.permute.xlu0 %273
    %275 = vrot.lane.b32.xlu0 %v270, 6
    %v276 = vpop.permute.xlu0 %275
    %277 = vrot.lane.b32.xlu0 %v271, 6
    %v278 = vpop.permute.xlu0 %277
    %279 = vrot.lane.b32.xlu0 %v272, 6
    %v280 = vpop.permute.xlu0 %279
    %vm281 = vcmp.ge.s32.totalorder %v267, 6
    %v282 = vsel %vm281, %v274, 0.0
    %v283 = vsel %vm281, %v276, 0.0
    %v284 = vsel %vm281, %v278, 0.0
    %v285 = vsel %vm281, %v280, 0.0
    %286 = vrot.lane.b32.xlu0 %v269, 5
    %v287 = vpop.permute.xlu0 %286
    %288 = vrot.lane.b32.xlu0 %v270, 5
    %v289 = vpop.permute.xlu0 %288
    %290 = vrot.lane.b32.xlu0 %v271, 5
    %v291 = vpop.permute.xlu0 %290
    %292 = vrot.lane.b32.xlu0 %v272, 5
    %v293 = vpop.permute.xlu0 %292
    %vm294 = vcmp.ge.s32.totalorder %v267, 5
    %v295 = vsel %vm294, %v287, 0.0
    %v296 = vsel %vm294, %v289, 0.0
    %v297 = vsel %vm294, %v291, 0.0
    %v298 = vsel %vm294, %v293, 0.0
    %299 = vrot.lane.b32.xlu0 %v269, 4
    %v300 = vpop.permute.xlu0 %299
    %301 = vrot.lane.b32.xlu0 %v270, 4
    %v302 = vpop.permute.xlu0 %301
    %303 = vrot.lane.b32.xlu0 %v271, 4
    %v304 = vpop.permute.xlu0 %303
    %305 = vrot.lane.b32.xlu0 %v272, 4
    %v306 = vpop.permute.xlu0 %305
    %vm307 = vcmp.ge.s32.totalorder %v267, 4
    %v308 = vsel %vm307, %v300, 0.0
    %v309 = vsel %vm307, %v302, 0.0
    %v310 = vsel %vm307, %v304, 0.0
    %v311 = vsel %vm307, %v306, 0.0
    %312 = vrot.lane.b32.xlu0 %v269, 3
    %v313 = vpop.permute.xlu0 %312
    %314 = vrot.lane.b32.xlu0 %v270, 3
    %v315 = vpop.permute.xlu0 %314
    %316 = vrot.lane.b32.xlu0 %v271, 3
    %v317 = vpop.permute.xlu0 %316
    %318 = vrot.lane.b32.xlu0 %v272, 3
    %v319 = vpop.permute.xlu0 %318
    %vm320 = vcmp.ge.s32.totalorder %v267, 3
    %v321 = vsel %vm320, %v313, 0.0
    %v322 = vsel %vm320, %v315, 0.0
    %v323 = vsel %vm320, %v317, 0.0
    %v324 = vsel %vm320, %v319, 0.0
    %325 = vrot.lane.b32.xlu0 %v269, 2
    %v326 = vpop.permute.xlu0 %325
    %327 = vrot.lane.b32.xlu0 %v270, 2
    %v328 = vpop.permute.xlu0 %327
    %329 = vrot.lane.b32.xlu0 %v271, 2
    %v330 = vpop.permute.xlu0 %329
    %331 = vrot.lane.b32.xlu0 %v272, 2
    %v332 = vpop.permute.xlu0 %331
    %vm333 = vcmp.ge.s32.totalorder %v267, 2
    %v334 = vsel %vm333, %v326, 0.0
    %v335 = vsel %vm333, %v328, 0.0
    %v336 = vsel %vm333, %v330, 0.0
    %v337 = vsel %vm333, %v332, 0.0
    %338 = vrot.lane.b32.xlu0 %v269, 1
    %v339 = vpop.permute.xlu0 %338
    %340 = vrot.lane.b32.xlu0 %v270, 1
    %v341 = vpop.permute.xlu0 %340
    %342 = vrot.lane.b32.xlu0 %v271, 1
    %v343 = vpop.permute.xlu0 %342
    %344 = vrot.lane.b32.xlu0 %v272, 1
    %v345 = vpop.permute.xlu0 %344
    %vm346 = vcmp.ge.s32.totalorder %v267, 1
    %v347 = vsel %vm346, %v339, 0.0
    %v348 = vsel %vm346, %v341, 0.0
    %v349 = vsel %vm346, %v343, 0.0
    %v350 = vsel %vm346, %v345, 0.0
    %v351 = vld [vmem:[#allocation2] sm:$0xff]
    %v352 = vld [vmem:[#allocation2 + $0x8] sm:$0xff]
    %v353 = vld [vmem:[#allocation2 + $0x10] sm:$0xff]
    %v354 = vld [vmem:[#allocation2 + $0x18] sm:$0xff]
    %v355 = vld [vmem:[#allocation2 + $0x20] sm:$0xff]
    %v356 = vld [vmem:[#allocation2 + $0x28] sm:$0xff]
    %v357 = vld [vmem:[#allocation2 + $0x30] sm:$0xff]
    %v358 = vld [vmem:[#allocation2 + $0x38] sm:$0xff]
    %v359 = vld [vmem:[#allocation2 + $0x40] sm:$0xff]
    %v360 = vld [vmem:[#allocation2 + $0x48] sm:$0xff]
    %v361 = vld [vmem:[#allocation2 + $0x50] sm:$0xff]
    %v362 = vld [vmem:[#allocation2 + $0x58] sm:$0xff]
    %v363 = vld [vmem:[#allocation2 + $0x60] sm:$0xff]
    %v364 = vld [vmem:[#allocation2 + $0x68] sm:$0xff]
    %v365 = vld [vmem:[#allocation2 + $0x70] sm:$0xff]
    %v366 = vld [vmem:[#allocation2 + $0x78] sm:$0xff]
    %v367 = vld [vmem:[#allocation2 + $0x80] sm:$0xff]
    %v368 = vld [vmem:[#allocation2 + $0x88] sm:$0xff]
    %v369 = vld [vmem:[#allocation2 + $0x90] sm:$0xff]
    %v370 = vld [vmem:[#allocation2 + $0x98] sm:$0xff]
    %v371 = vld [vmem:[#allocation2 + $0xa0] sm:$0xff]
    %v372 = vld [vmem:[#allocation2 + $0xa8] sm:$0xff]
    %v373 = vld [vmem:[#allocation2 + $0xb0] sm:$0xff]
    %v374 = vld [vmem:[#allocation2 + $0xb8] sm:$0xff]
    %vm375 = vcmask 785408
    %v377 = vsel %vm375, %v352, 0
    %v380 = vsel %vm375, %v354, 0
    %v383 = vsel %vm375, %v356, 0
    %v386 = vsel %vm375, %v358, 0
    %v389 = vsel %vm375, %v360, 0
    %v392 = vsel %vm375, %v362, 0
    %v395 = vsel %vm375, %v364, 0
    %v398 = vsel %vm375, %v366, 0
    %v401 = vsel %vm375, %v368, 0
    %v404 = vsel %vm375, %v370, 0
    %v407 = vsel %vm375, %v372, 0
    %v410 = vsel %vm375, %v374, 0
    %412 = vmatpush.msra.mxu0 %v324
    %413 = vmatpush.msra.mxu0 %v323
    %414 = vmatpush.msra.mxu0 %v322
    %415 = vmatpush.msra.mxu0 %v321
    %416 = vmatpush.msra.mxu0 %v311
    %417 = vmatpush.msra.mxu0 %v310
    %418 = vmatpush.msra.mxu0 %v309
    %419 = vmatpush.msra.mxu0 %v308
    %420 = vmatpush.msra.mxu0 %v298
    %421 = vmatpush.msra.mxu0 %v297
    %422 = vmatpush.msra.mxu0 %v296
    %423 = vmatpush.msra.mxu0 %v295
    %424 = vmatpush.msra.mxu0 %v285
    %425 = vmatpush.msra.mxu0 %v284
    %426 = vmatpush.msra.mxu0 %v283
    %427 = vmatpush.msra.mxu0 %v282
    %428 = vmatmul.f32.gmra.mxu0 %v351
    %v429 = vpop.f32.mrf.mxu0
    %v430 = vadd.f32 0.0, %v429
    %431 = vmatmul.f32.gmra.mxu0 %v353
    %v432 = vpop.f32.mrf.mxu0
    %v433 = vadd.f32 0.0, %v432
    %434 = vmatmul.f32.gmra.mxu0 %v355
    %v435 = vpop.f32.mrf.mxu0
    %v436 = vadd.f32 0.0, %v435
    %437 = vmatmul.f32.gmra.mxu0 %v357
    %v438 = vpop.f32.mrf.mxu0
    %v439 = vadd.f32 0.0, %v438
    %440 = vmatmul.f32.gmra.mxu0 %v359
    %v441 = vpop.f32.mrf.mxu0
    %v442 = vadd.f32 0.0, %v441
    %443 = vmatmul.f32.gmra.mxu0 %v361
    %v444 = vpop.f32.mrf.mxu0
    %v445 = vadd.f32 0.0, %v444
    %446 = vmatmul.f32.gmra.mxu0 %v363
    %v447 = vpop.f32.mrf.mxu0
    %v448 = vadd.f32 0.0, %v447
    %449 = vmatmul.f32.gmra.mxu0 %v365
    %v450 = vpop.f32.mrf.mxu0
    %v451 = vadd.f32 0.0, %v450
    %452 = vmatmul.f32.gmra.mxu0 %v367
    %v453 = vpop.f32.mrf.mxu0
    %v454 = vadd.f32 0.0, %v453
    %455 = vmatmul.f32.gmra.mxu0 %v369
    %v456 = vpop.f32.mrf.mxu0
    %v457 = vadd.f32 0.0, %v456
    %458 = vmatmul.f32.gmra.mxu0 %v371
    %v459 = vpop.f32.mrf.mxu0
    %v460 = vadd.f32 0.0, %v459
    %461 = vmatmul.f32.gmra.mxu0 %v373
    %v462 = vpop.f32.mrf.mxu0
    %v463 = vadd.f32 0.0, %v462
    %464 = vdwg.mxu0
    %465 = vmatpush.msra.mxu0 0.0
    %466 = vmatpush.msra.mxu0 0.0
    %467 = vmatpush.msra.mxu0 0.0
    %468 = vmatpush.msra.mxu0 0.0
    %469 = vmatpush.msra.mxu0 %v272
    %470 = vmatpush.msra.mxu0 %v271
    %471 = vmatpush.msra.mxu0 %v270
    %472 = vmatpush.msra.mxu0 %v269
    %473 = vmatpush.msra.mxu0 %v350
    %474 = vmatpush.msra.mxu0 %v349
    %475 = vmatpush.msra.mxu0 %v348
    %476 = vmatpush.msra.mxu0 %v347
    %477 = vmatpush.msra.mxu0 %v337
    %478 = vmatpush.msra.mxu0 %v336
    %479 = vmatpush.msra.mxu0 %v335
    %480 = vmatpush.msra.mxu0 %v334
    %481 = vmatmul.f32.gmra.mxu0 %v377
    %v482 = vpop.f32.mrf.mxu0
    %v483 = vadd.f32 %v430, %v482
    %484 = vmatmul.f32.gmra.mxu0 %v380
    %v485 = vpop.f32.mrf.mxu0
    %v486 = vadd.f32 %v433, %v485
    %487 = vmatmul.f32.gmra.mxu0 %v383
    %v488 = vpop.f32.mrf.mxu0
    %v489 = vadd.f32 %v436, %v488
    %490 = vmatmul.f32.gmra.mxu0 %v386
    %v491 = vpop.f32.mrf.mxu0
    %v492 = vadd.f32 %v439, %v491
    %493 = vmatmul.f32.gmra.mxu0 %v389
    %v494 = vpop.f32.mrf.mxu0
    %v495 = vadd.f32 %v442, %v494
    %496 = vmatmul.f32.gmra.mxu0 %v392
    %v497 = vpop.f32.mrf.mxu0
    %v498 = vadd.f32 %v445, %v497
    %499 = vmatmul.f32.gmra.mxu0 %v395
    %v500 = vpop.f32.mrf.mxu0
    %v501 = vadd.f32 %v448, %v500
    %502 = vmatmul.f32.gmra.mxu0 %v398
    %v503 = vpop.f32.mrf.mxu0
    %v504 = vadd.f32 %v451, %v503
    %505 = vmatmul.f32.gmra.mxu0 %v401
    %v506 = vpop.f32.mrf.mxu0
    %v507 = vadd.f32 %v454, %v506
    %508 = vmatmul.f32.gmra.mxu0 %v404
    %v509 = vpop.f32.mrf.mxu0
    %v510 = vadd.f32 %v457, %v509
    %511 = vmatmul.f32.gmra.mxu0 %v407
    %v512 = vpop.f32.mrf.mxu0
    %v513 = vadd.f32 %v460, %v512
    %514 = vmatmul.f32.gmra.mxu0 %v410
    %v515 = vpop.f32.mrf.mxu0
    %v516 = vadd.f32 %v463, %v515
    %517 = vdwg.mxu0
    %v518 = vmax.f32 %v483, 0.0
    %v519 = vmax.f32 %v486, 0.0
    %v520 = vmax.f32 %v489, 0.0
    %v521 = vmax.f32 %v492, 0.0
    %v522 = vmul.f32 %v518, %v518
    %v523 = vmul.f32 %v519, %v519
    %v524 = vmul.f32 %v520, %v520
    %v525 = vmul.f32 %v521, %v521
    %v526 = vmul.f32 %v522, %v518
    %v527 = vmul.f32 %v523, %v519
    %v528 = vmul.f32 %v524, %v520
    %v529 = vmul.f32 %v525, %v521
    %v530 = vmul.f32 %v526, %v495
    %v531 = vmul.f32 %v527, %v498
    %v532 = vmul.f32 %v528, %v501
    %v533 = vmul.f32 %v529, %v504
    %v534 = vadd.f32 %v530, %v507
    %v535 = vadd.f32 %v531, %v510
    %v536 = vadd.f32 %v532, %v513
    %v537 = vadd.f32 %v533, %v516
    %v538 = vadd.f32 %v534, %v535
    %v539 = vadd.f32 %v538, %v536
    %v540 = vadd.f32 %v539, %v537
    %v541 = vrot.slane %v540, 4
    %v542 = vadd.f32 %v540, %v541
    %v543 = vrot.slane %v542, 2
    %v544 = vadd.f32 %v542, %v543
    %v545 = vrot.slane %v544, 1
    %v546 = vadd.f32 %v544, %v545
    %v547 = vmul.f32 %v546, %v220
    %v548 = vsub.f32 %v534, %v547
    %v549 = vsub.f32 %v535, %v547
    %v550 = vsub.f32 %v536, %v547
    %v551 = vsub.f32 %v537, %v547
    %v552 = vmul.f32 %v548, %v548
    %v553 = vmul.f32 %v549, %v549
    %v554 = vmul.f32 %v550, %v550
    %v555 = vmul.f32 %v551, %v551
    %v556 = vadd.f32 %v552, %v553
    %v557 = vadd.f32 %v556, %v554
    %v558 = vadd.f32 %v557, %v555
    %v559 = vrot.slane %v558, 4
    %v560 = vadd.f32 %v558, %v559
    %v561 = vrot.slane %v560, 2
    %v562 = vadd.f32 %v560, %v561
    %v563 = vrot.slane %v562, 1
    %v564 = vadd.f32 %v562, %v563
    %v565 = vrsqrt.pop %v564
    %v566 = vmul.f32 %v565, %v564
    %v567 = vmul.f32 %v566, %v565
    %v568 = vmul.f32 0.5, %v567
    %v569 = vsub.f32 1.5, %v568
    %v570 = vmul.f32 %v565, %v569
    %vm571 = vweird.f32 %v564
    %vm572 = vweird.f32 %v565
    %vm573 = vmor %vm571, %vm572
    %v574 = vsel %vm573, %v565, %v570
    %v575 = vmul.f32 %v574, 5.656854
    %v576 = vmul.f32 %v548, %v575
    %v577 = vmul.f32 %v549, %v575
    %v578 = vmul.f32 %v550, %v575
    %v579 = vmul.f32 %v551, %v575
    %v580 = vsel %vm268, %v576, 0.0
    %v581 = vsel %vm268, %v577, 0.0
    %v582 = vsel %vm268, %v578, 0.0
    %v583 = vsel %vm268, %v579, 0.0
    %v584 = vld [vmem:[%s4] sm:$0xff]
    %v585 = vld [vmem:[%s4 + $0x8] sm:$0xff]
    %vm586 = vcmask 261120
    %v588 = vsel %vm586, %v584, 0
    %v591 = vsel %vm586, %v585, 0
    %593 = vmatpush.msra.mxu0 0.0
    %594 = vmatpush.msra.mxu0 0.0
    %595 = vmatpush.msra.mxu0 0.0
    %596 = vmatpush.msra.mxu0 0.0
    %597 = vmatpush.msra.mxu0 0.0
    %598 = vmatpush.msra.mxu0 0.0
    %599 = vmatpush.msra.mxu0 0.0
    %600 = vmatpush.msra.mxu0 0.0
    %601 = vmatpush.msra.mxu0 0.0
    %602 = vmatpush.msra.mxu0 0.0
    %603 = vmatpush.msra.mxu0 0.0
    %604 = vmatpush.msra.mxu0 0.0
    %605 = vmatpush.msra.mxu0 %v583
    %606 = vmatpush.msra.mxu0 %v582
    %607 = vmatpush.msra.mxu0 %v581
    %608 = vmatpush.msra.mxu0 %v580
    %609 = vmatmul.f32.gmra.mxu0 %v588
    %v610 = vpop.f32.mrf.mxu0
    %v611 = vadd.f32 0.0, %v610
    %612 = vmatmul.f32.gmra.mxu0 %v591
    %v613 = vpop.f32.mrf.mxu0
    %v614 = vadd.f32 0.0, %v613
    %615 = vdwg.mxu0
    %616 = vst [vmem:[%s5] sm:$0xff] %v611
    %617 = vst [vmem:[%s5 + $0x8] sm:$0xff] %v614
    // Predicated region
    $region26: #{linear_attention_cell.1} parent=1 // pred_check
      _
    $region27: #{linear_attention_cell.1} parent=1 // pred_check_branch
      %619 = sbr.rel (0) target = $region29
    $region28: #{linear_attention_cell.1} parent=1 // pred_region
      _
    $region29: #{linear_attention_cell.1} parent=1 // pred_fallthru
      _
    // Predicated region
    $region30: #{linear_attention_cell.1} parent=1 // pred_check
      _
    $region31: #{linear_attention_cell.1} parent=1 // pred_check_branch
      %621 = sbr.rel (0) target = $region33
    $region32: #{linear_attention_cell.1} parent=1 // pred_region
      _
    $region33: #{linear_attention_cell.1} parent=1 // pred_fallthru
      _
    %622 = vsyncpa [#allocation3], 1

</llo_original>
